<compile_context>
chip_gen: v6e
topology: v6e:2x2x1
jax: 0.10.0
libtpu: 0.0.40
codegen_flags: <defaults>
</compile_context>

<pallas_src>
import functools

import jax
import jax.numpy as jnp
from jax import lax
from jax.experimental import pallas as pl
from jax.experimental.pallas import tpu as pltpu

# Cross-generation-safe defaults:
#  * ~8 MiB per (tb, seq, c) tile; the pipeline holds 2x input + 2x output
#    tiles (= 4x tile) plus two small weight blocks -> ~33 MiB of VMEM.
#  * explicit 48 MiB scoped-VMEM limit: below v7x's 64 MiB physical VMEM and
#    v5e/v6e's 128 MiB, and far above v5e's 16 MiB default scoped limit.
_TILE_BYTE_BUDGET = 8 << 20
_VMEM_LIMIT_BYTES = 48 << 20
# f32 elements allowed live per inner chunk iteration (~16 of the 64 vregs),
# so the squeeze/scale loops stay (mostly) spill-free.
_CHUNK_F32_ELEMS = (64 << 10) // 4


# --------------------------------------------------------------------------
# Tiling heuristics
# --------------------------------------------------------------------------
def _largest_divisor_leq(n, target):
    target = int(max(1, min(n, target)))
    best = 1
    for d in range(1, target + 1):
        if n % d == 0:
            best = d
    return best


def _pick_batch_tile(b, per_row_bytes, byte_budget):
    """Batch rows per grid step, sized against the per-tile byte budget."""
    tb = max(1, byte_budget // max(per_row_bytes, 1))
    tb = min(tb, b)
    if b >= 2:
        # Keep >= 2 grid steps so the "parallel" axis can span both
        # TensorCores on v7x (costs ~nothing on single-TC chips).
        tb = min(tb, (b + 1) // 2)
    return int(max(1, tb))


def _pick_inner_chunks(tb, seq, c):
    """(bchunk, seq_chunk): in-kernel chunking of one (tb, seq, c) batch tile.

    Bounds the f32 working set of one squeeze/scale loop iteration
    (bchunk * seq_chunk * c elements) to ~_CHUNK_F32_ELEMS so the hot loops do
    not overflow the 64-vreg file and spill to VMEM.
    """
    row_elems = seq * c
    if row_elems <= _CHUNK_F32_ELEMS:
        bchunk = int(max(1, min(tb, _CHUNK_F32_ELEMS // row_elems)))
        seq_chunk = seq
    else:
        bchunk = 1
        target = max(8, _CHUNK_F32_ELEMS // max(c, 1))
        seq_chunk = _largest_divisor_leq(seq, target)
    return bchunk, seq_chunk


def _pick_seq_tile(bt, seq, c, itemsize, byte_budget):
    """Seq rows per block for the two-pass path (multiple of 8 or full seq)."""
    raw = max(1, byte_budget // max(bt * c * itemsize, 1))
    if raw >= seq or seq <= 8:
        return seq
    return max(8, (raw // 8) * 8)


# --------------------------------------------------------------------------
# Fused single-pass kernel (one HBM read + one HBM write of x per batch tile)
# --------------------------------------------------------------------------
def _se_fused_kernel(x_ref, w1_ref, w2_ref, o_ref, *, bchunk, seq_chunk):
    # x_ref:  (TB, SEQ, C)   batch tile        (TB = nb * bchunk)
    # w1_ref: (C, H)         first linear (transposed vs. PyTorch (out, in))
    # w2_ref: (H, C)         second linear (transposed vs. PyTorch)
    tb, seq, c = x_ref.shape
    nb = tb // bchunk          # bchunk divides tb (wrapper guarantees)
    ns = seq // seq_chunk      # seq_chunk divides seq (wrapper guarantees)
    inv_seq = 1.0 / seq

    # Modest unroll keeps LLO visibility without register-pressure blowup.
    inner_unroll = True if ns <= 8 else 4
    # Sublane-tile sub-accumulator: hot loop is pure VPU vreg adds, a single
    # cross-sublane XLU reduce happens after the loop.
    use_subacc = (seq_chunk % 8 == 0) and (c % 128 == 0)

    def process_subblock(bi, carry):
        b0 = pl.multiple_of(bi * bchunk, bchunk)
        bsl = pl.ds(b0, bchunk)

        # ---- squeeze: mean over seq, accumulated chunk-by-chunk so only a
        # small f32 accumulator stays live across the loop.
        if use_subacc:
            def sum_body(si, acc):
                s0 = pl.multiple_of(si * seq_chunk, seq_chunk)
                xc = x_ref[bsl, pl.ds(s0, seq_chunk), :].astype(jnp.float32)
                xc = xc.reshape(bchunk, seq_chunk // 8, 8, c)
                return acc + jnp.sum(xc, axis=1)          # VPU vreg adds

            part = lax.fori_loop(0, ns, sum_body,
                                 jnp.zeros((bchunk, 8, c), jnp.float32),
                                 unroll=inner_unroll)
            y = jnp.sum(part, axis=1)                      # one XLU reduce
        else:
            def sum_body(si, acc):
                s0 = pl.multiple_of(si * seq_chunk, seq_chunk)
                xc = x_ref[bsl, pl.ds(s0, seq_chunk), :].astype(jnp.float32)
                return acc + jnp.sum(xc, axis=1)

            y = lax.fori_loop(0, ns, sum_body,
                              jnp.zeros((bchunk, c), jnp.float32),
                              unroll=inner_unroll)
        y = y * inv_seq                                    # (bchunk, C)

        # ---- excitation: Linear -> ReLU -> Linear -> Sigmoid (f32 on MXU).
        hid = jnp.dot(y, w1_ref[...], preferred_element_type=jnp.float32)
        hid = jnp.maximum(hid, 0.0)
        s = jnp.dot(hid, w2_ref[...], preferred_element_type=jnp.float32)
        s = jax.nn.sigmoid(s)                              # (bchunk, C)

        # Gate cast + broadcast hoisted out of the store loop; the scale
        # multiply runs in the I/O dtype (bf16-native VALU on v6e/v7x).
        s_b = jnp.broadcast_to(s.astype(o_ref.dtype)[:, None, :],
                               (bchunk, seq_chunk, c))

        # ---- scale: re-read x from VMEM chunk-by-chunk and write the gated
        # result; x is never carried in vregs across the gate computation.
        def scale_body(si, cc):
            s0 = pl.multiple_of(si * seq_chunk, seq_chunk)
            sl = pl.ds(s0, seq_chunk)
            o_ref[bsl, sl, :] = (x_ref[bsl, sl, :] * s_b).astype(o_ref.dtype)
            return cc

        lax.fori_loop(0, ns, scale_body, 0, unroll=inner_unroll)
        return carry

    lax.fori_loop(0, nb, process_subblock, 0,
                  unroll=True if nb <= 2 else False)


def _se_layer_fused(x, w1, w2, byte_budget, vmem_limit_bytes):
    b, seq, c = x.shape
    h = w1.shape[1]
    itemsize = x.dtype.itemsize

    tb = _pick_batch_tile(b, seq * c * itemsize, byte_budget)
    bchunk, seq_chunk = _pick_inner_chunks(tb, seq, c)
    tb = max(bchunk, (tb // bchunk) * bchunk)     # make bchunk divide tb
    grid = (pl.cdiv(b, tb),)

    # HBM-bandwidth bound: ~2*b*seq*c*itemsize bytes moved, a handful of flops.
    cost = pl.CostEstimate(
        flops=4 * b * c * h + 2 * b * seq * c,
        transcendentals=b * c,
        bytes_accessed=2 * b * seq * c * itemsize
        + (c * h + h * c) * w1.dtype.itemsize,
    )

    kernel = functools.partial(_se_fused_kernel, bchunk=bchunk,
                               seq_chunk=seq_chunk)

    return pl.pallas_call(
        kernel,
        out_shape=jax.ShapeDtypeStruct((b, seq, c), x.dtype),
        grid_spec=pltpu.PrefetchScalarGridSpec(
            num_scalar_prefetch=0,
            grid=grid,
            in_specs=[
                pl.BlockSpec((tb, seq, c), lambda i: (i, 0, 0)),
                pl.BlockSpec((c, h), lambda i: (0, 0)),
                pl.BlockSpec((h, c), lambda i: (0, 0)),
            ],
            out_specs=pl.BlockSpec((tb, seq, c), lambda i: (i, 0, 0)),
        ),
        compiler_params=pltpu.CompilerParams(
            dimension_semantics=("parallel",),
            vmem_limit_bytes=vmem_limit_bytes),
        cost_estimate=cost,
    )(x, w1, w2)


# --------------------------------------------------------------------------
# Two-pass fallback: rows too large for a fused (tb, seq, c) tile.
#   Pass 1: gates (b, c) via masked partial-sum accumulation over seq tiles.
#   Pass 2: stream x again and apply the gate.
# --------------------------------------------------------------------------
def _gate_kernel(x_ref, w1_ref, w2_ref, g_ref, acc_ref, *, seq_total):
    j = pl.program_id(1)

    @pl.when(j == 0)
    def _():
        acc_ref[...] = jnp.zeros_like(acc_ref)

    ts, c = x_ref.shape[1], x_ref.shape[2]
    xc = x_ref[...].astype(jnp.float32)
    # Mask seq rows past the true sequence length (partial last seq tile).
    row = lax.broadcasted_iota(jnp.int32, (ts, c), 0)
    valid = (j * ts + row) < seq_total
    xc = jnp.where(valid[None, :, :], xc, 0.0)
    acc_ref[...] += jnp.sum(xc, axis=1)

    @pl.when(j == pl.num_programs(1) - 1)
    def _():
        y = acc_ref[...] * (1.0 / seq_total)
        hid = jnp.dot(y, w1_ref[...], preferred_element_type=jnp.float32)
        hid = jnp.maximum(hid, 0.0)
        s = jnp.dot(hid, w2_ref[...], preferred_element_type=jnp.float32)
        g_ref[...] = jax.nn.sigmoid(s)


def _scale_kernel(x_ref, g_ref, o_ref):
    gate = g_ref[...].astype(o_ref.dtype)[:, None, :]
    o_ref[...] = (x_ref[...] * gate).astype(o_ref.dtype)


def _se_layer_two_pass(x, w1, w2, byte_budget, vmem_limit_bytes):
    b, seq, c = x.shape
    h = w1.shape[1]
    itemsize = x.dtype.itemsize

    # Batch-tile must be a multiple of 8 or equal b (it is the second-to-last
    # dim of the (tb, c) gate blocks).
    tbg = b if b <= 8 else 8
    tsg = _pick_seq_tile(tbg, seq, c, itemsize, byte_budget)

    gates = pl.pallas_call(
        functools.partial(_gate_kernel, seq_total=seq),
        out_shape=jax.ShapeDtypeStruct((b, c), jnp.float32),
        grid_spec=pltpu.PrefetchScalarGridSpec(
            num_scalar_prefetch=0,
            grid=(pl.cdiv(b, tbg), pl.cdiv(seq, tsg)),
            in_specs=[
                pl.BlockSpec((tbg, tsg, c), lambda i, j: (i, j, 0)),
                pl.BlockSpec((c, h), lambda i, j: (0, 0)),
                pl.BlockSpec((h, c), lambda i, j: (0, 0)),
            ],
            out_specs=pl.BlockSpec((tbg, c), lambda i, j: (i, 0)),
            scratch_shapes=[pltpu.VMEM((tbg, c), jnp.float32)],
        ),
        compiler_params=pltpu.CompilerParams(
            dimension_semantics=("parallel", "arbitrary"),
            vmem_limit_bytes=vmem_limit_bytes),
    )(x, w1, w2)

    tbs = b if b <= 8 else 8
    tss = _pick_seq_tile(tbs, seq, c, itemsize, byte_budget)

    cost = pl.CostEstimate(
        flops=2 * b * seq * c,
        transcendentals=0,
        bytes_accessed=2 * b * seq * c * itemsize + b * c * 4,
    )

    return pl.pallas_call(
        _scale_kernel,
        out_shape=jax.ShapeDtypeStruct((b, seq, c), x.dtype),
        grid_spec=pltpu.PrefetchScalarGridSpec(
            num_scalar_prefetch=0,
            grid=(pl.cdiv(b, tbs), pl.cdiv(seq, tss)),
            in_specs=[
                pl.BlockSpec((tbs, tss, c), lambda i, j: (i, j, 0)),
                pl.BlockSpec((tbs, c), lambda i, j: (i, 0)),
            ],
            out_specs=pl.BlockSpec((tbs, tss, c), lambda i, j: (i, j, 0)),
        ),
        compiler_params=pltpu.CompilerParams(
            dimension_semantics=("parallel", "parallel"),
            vmem_limit_bytes=vmem_limit_bytes),
        cost_estimate=cost,
    )(x, gates)


# --------------------------------------------------------------------------
# Public entry point
# --------------------------------------------------------------------------
def se_layer(x, w1, w2, *, byte_budget=_TILE_BYTE_BUDGET,
             vmem_limit_bytes=_VMEM_LIMIT_BYTES):
    """x: (b, seq, c); w1: (c, c//r); w2: (c//r, c).

    PyTorch nn.Linear stores weights as (out, in); pass the transposed
    (in, out) weights here so the kernel runs plain y @ W.
    """
    b, seq, c = x.shape
    per_row = seq * c * x.dtype.itemsize
    if per_row <= byte_budget:
        return _se_layer_fused(x, w1, w2, byte_budget, vmem_limit_bytes)
    return _se_layer_two_pass(x, w1, w2, byte_budget, vmem_limit_bytes)


def se_layer_ref(x, w1, w2):
    y = jnp.mean(x, axis=1)                     # (b, c)
    y = jnp.maximum(y @ w1, 0.0)
    y = jax.nn.sigmoid(y @ w2)
    return x * y[:, None, :]


if __name__ == "__main__":
    key = jax.random.PRNGKey(0)
    kx, k1, k2, kx2 = jax.random.split(key, 4)

    # ---- Test 1: fused single-pass path (small shapes).
    B, SEQ, C, RED = 2, 8, 128, 16
    H = C // RED
    x = jax.random.normal(kx, (B, SEQ, C), dtype=jnp.float32)
    w1 = jax.random.normal(k1, (C, H), dtype=jnp.float32) * 0.1
    w2 = jax.random.normal(k2, (H, C), dtype=jnp.float32) * 0.1

    out = jax.block_until_ready(se_layer(x, w1, w2))
    ref = se_layer_ref(x, w1, w2)
    assert out.shape == (B, SEQ, C)
    assert jnp.allclose(out, ref, atol=1e-5, rtol=1e-5), "fused path mismatch"

    # ---- Test 2: two-pass fallback (forced via a tiny tile budget; SEQ=20
    # also exercises the masked partial seq tile since 20 % 8 != 0).
    SEQ2 = 20
    x2 = jax.random.normal(kx2, (B, SEQ2, C), dtype=jnp.float32)
    out2 = jax.block_until_ready(se_layer(x2, w1, w2, byte_budget=4096))
    ref2 = se_layer_ref(x2, w1, w2)
    assert out2.shape == (B, SEQ2, C)
    assert jnp.allclose(out2, ref2, atol=1e-5, rtol=1e-5), "two-pass mismatch"

    print("KERNEL_OK")
</pallas_src>

<mosaic_0001>
module attributes {stable_mosaic.version = 11 : i64} {
  func.func @_se_fused_kernel(%arg0: i32, %arg1: memref<1x8x128xf32, #tpu.memory_space<vmem>>, %arg2: memref<128x8xf32, #tpu.memory_space<vmem>>, %arg3: memref<8x128xf32, #tpu.memory_space<vmem>>, %arg4: memref<1x8x128xf32, #tpu.memory_space<vmem>>) attributes {dimension_semantics = [#tpu.dimension_semantics<parallel>], iteration_bounds = array<i64: 2>, scalar_prefetch = 0 : i64, scratch_operands = 0 : i64, tpu.core_type = #tpu.core_type<tc>, window_params = [{transform_indices = @transform_0, window_bounds = array<i64: 1, 8, 128>}, {pipeline_mode = #tpu.pipeline_mode<synchronous>, transform_indices = @transform_1, window_bounds = array<i64: 128, 8>}, {pipeline_mode = #tpu.pipeline_mode<synchronous>, transform_indices = @transform_2, window_bounds = array<i64: 8, 128>}, {transform_indices = @transform_3, window_bounds = array<i64: 1, 8, 128>}]} {
    %c0_i32 = arith.constant 0 : i32
    %c1_i32 = arith.constant 1 : i32
    %0 = arith.muli %c0_i32, %c1_i32 : i32
    %1 = tpu.assume_multiple %0, 1 : i32
    %cst = arith.constant 0.000000e+00 : f32
    %2 = vector.broadcast %cst : f32 to vector<1x8x128xf32>
    %c0_i32_0 = arith.constant 0 : i32
    %c8_i32 = arith.constant 8 : i32
    %3 = arith.muli %c0_i32_0, %c8_i32 : i32
    %4 = tpu.assume_multiple %3, 8 : i32
    %5 = arith.index_cast %1 : i32 to index
    %6 = arith.index_cast %4 : i32 to index
    %c0 = arith.constant 0 : index
    %7 = vector.load %arg1[%5, %6, %c0] : memref<1x8x128xf32, #tpu.memory_space<vmem>>, vector<1x8x128xf32>
    %8 = vector.shape_cast %7 : vector<1x8x128xf32> to vector<1x1x8x128xf32>
    %cst_1 = arith.constant dense<0.000000e+00> : vector<1x8x128xf32>
    %9 = vector.multi_reduction <add>, %8, %cst_1 [1] : vector<1x1x8x128xf32> to vector<1x8x128xf32>
    %10 = arith.addf %2, %9 : vector<1x8x128xf32>
    %c1_i32_2 = arith.constant 1 : i32
    %cst_3 = arith.constant dense<0.000000e+00> : vector<1x128xf32>
    %11 = vector.multi_reduction <add>, %10, %cst_3 [1] : vector<1x8x128xf32> to vector<1x128xf32>
    %cst_4 = arith.constant 1.250000e-01 : f32
    %12 = vector.broadcast %cst_4 : f32 to vector<1x128xf32>
    %13 = arith.mulf %11, %12 : vector<1x128xf32>
    %c0_5 = arith.constant 0 : index
    %c0_6 = arith.constant 0 : index
    %14 = vector.load %arg2[%c0_5, %c0_6] : memref<128x8xf32, #tpu.memory_space<vmem>>, vector<128x8xf32>
    %cst_7 = arith.constant dense<0.000000e+00> : vector<1x8xf32>
    %15 = tpu.matmul %13, %14, %cst_7 {dimension_numbers = #tpu.dot_dimension_numbers<[1], [0], [0], [1], [0, 0, 1, 1], [], []>} : vector<1x128xf32>, vector<128x8xf32>, vector<1x8xf32> -> vector<1x8xf32>
    %cst_8 = arith.constant 0.000000e+00 : f32
    %16 = vector.broadcast %cst_8 : f32 to vector<1x8xf32>
    %17 = arith.maximumf %15, %16 : vector<1x8xf32>
    %c0_9 = arith.constant 0 : index
    %c0_10 = arith.constant 0 : index
    %18 = vector.load %arg3[%c0_9, %c0_10] : memref<8x128xf32, #tpu.memory_space<vmem>>, vector<8x128xf32>
    %cst_11 = arith.constant dense<0.000000e+00> : vector<1x128xf32>
    %19 = tpu.matmul %17, %18, %cst_11 {dimension_numbers = #tpu.dot_dimension_numbers<[1], [0], [0], [1], [0, 0, 1, 1], [], []>} : vector<1x8xf32>, vector<8x128xf32>, vector<1x128xf32> -> vector<1x128xf32>
    %20 = arith.negf %19 : vector<1x128xf32>
    %21 = math.exp %20 : vector<1x128xf32>
    %cst_12 = arith.constant 1.000000e+00 : f32
    %22 = vector.broadcast %cst_12 : f32 to vector<1x128xf32>
    %23 = arith.addf %22, %21 : vector<1x128xf32>
    %24 = arith.divf %22, %23 : vector<1x128xf32>
    %25 = vector.shape_cast %24 : vector<1x128xf32> to vector<1x1x128xf32>
    %26 = vector.shape_cast %25 : vector<1x1x128xf32> to vector<1x1x128xf32>
    %27 = vector.broadcast %26 : vector<1x1x128xf32> to vector<1x8x128xf32>
    %c0_i32_13 = arith.constant 0 : i32
    %c8_i32_14 = arith.constant 8 : i32
    %28 = arith.muli %c0_i32_13, %c8_i32_14 : i32
    %29 = tpu.assume_multiple %28, 8 : i32
    %30 = arith.index_cast %1 : i32 to index
    %31 = arith.index_cast %29 : i32 to index
    %c0_15 = arith.constant 0 : index
    %32 = vector.load %arg1[%30, %31, %c0_15] : memref<1x8x128xf32, #tpu.memory_space<vmem>>, vector<1x8x128xf32>
    %33 = arith.mulf %32, %27 : vector<1x8x128xf32>
    %34 = arith.index_cast %1 : i32 to index
    %35 = arith.index_cast %29 : i32 to index
    %c0_16 = arith.constant 0 : index
    %36 = vector.load %arg4[%34, %35, %c0_16] : memref<1x8x128xf32, #tpu.memory_space<vmem>>, vector<1x8x128xf32>
    tpu.vector_store %arg4[%34, %35, %c0_16], %33 {strides = array<i32>} : memref<1x8x128xf32, #tpu.memory_space<vmem>>, vector<1x8x128xf32>,
    %c1_i32_17 = arith.constant 1 : i32
    %c1_i32_18 = arith.constant 1 : i32
    return
  }
  func.func @transform_0(%arg0: i32) -> (i32, i32, i32) {
    %c0_i32 = arith.constant 0 : i32
    %c0_i32_0 = arith.constant 0 : i32
    %c0_i32_1 = arith.constant 0 : i32
    return %arg0, %c0_i32, %c0_i32_0 : i32, i32, i32
  }
  func.func @transform_1(%arg0: i32) -> (i32, i32) {
    %c0_i32 = arith.constant 0 : i32
    %c0_i32_0 = arith.constant 0 : i32
    %c0_i32_1 = arith.constant 0 : i32
    return %c0_i32, %c0_i32_0 : i32, i32
  }
  func.func @transform_2(%arg0: i32) -> (i32, i32) {
    %c0_i32 = arith.constant 0 : i32
    %c0_i32_0 = arith.constant 0 : i32
    %c0_i32_1 = arith.constant 0 : i32
    return %c0_i32, %c0_i32_0 : i32, i32
  }
  func.func @transform_3(%arg0: i32) -> (i32, i32, i32) {
    %c0_i32 = arith.constant 0 : i32
    %c0_i32_0 = arith.constant 0 : i32
    %c0_i32_1 = arith.constant 0 : i32
    return %arg0, %c0_i32, %c0_i32_0 : i32, i32, i32
  }
}

</mosaic_0001>

<llo_original>
// kernel: tpu_custom_call.1
$region0: #{tpu_custom_call.1}
  #allocation0 [shape = 'u32[]', space=smem, size = 0x4, offset = 0x4, fixed_abs, tag = 'smem constant byte address 0x4 - core index']
  #allocation1 [shape = 'u32[144,128]{1,0:T(1,128)}', space=vmem, size = 0x12000, scoped, tag = 'internal scratch']
  %s0 = inlined_call_operand.vmem [shape: f32[2,8,128], index: 0, kind: input, shape index: {}]
  %s1 = inlined_call_operand.vmem [shape: f32[128,8], index: 1, kind: input, shape index: {}]
  %s2 = inlined_call_operand.vmem [shape: f32[8,128], index: 2, kind: input, shape index: {}]
  %s3 = inlined_call_operand.hbm [shape: f32[2,8,128], index: 3, kind: output, shape index: {}]
  %s4 = sld [smem:[#allocation0]]
  $region45: #{tpu_custom_call.1} parent=0
    _
  %s6 = ssub.s32 1, %s4
  %s7 = scalar_select 0, %s6, %s4
  $region1: #{tpu_custom_call.1} parent=0
    #allocation2 [shape = 'u8[8192]{0}', space=vmem, size = 0x2000, scoped, tag = 'output window, operand 0']
    #allocation3 [shape = 's32[2]{0}', space=sflag, size = 0x8, scoped, tag = 'scoped memory for tpu_custom_call.1']
    %8 = vsyncpa [#allocation3], 0
    %s9 = scalar_lea.sflag [#allocation3], 1
    %10 = vsyncpa %s9, 0
    loop: start=0, step=1, limit=4
    $region2: #{tpu_custom_call.1} parent=1 // loop_pre_header
      _
    $region3: #{tpu_custom_call.1} parent=1 // loop_header
      %s12 = sphi 0, %s16
      %p13 = scmp.ge.s32.totalorder %s12, 4
      %s22 = sphi 0, %s24
      %s25 = sphi 0, %s22
      %s26 = sphi 0, %s25
      %s42 = sphi 0, %s26
      %s46 = sphi 0, %s46
      %s48 = sphi 0, %s46
      %s49 = sphi 0, %s48
      %s63 = sphi 0, %s49
      %s67 = sphi 0, %s67
      %s69 = sphi 0, %s67
      %s70 = sphi 0, %s69
      %s84 = sphi 0, %s70
      %s90 = sphi 0, %s92
      %s93 = sphi 0, %s90
      %s94 = sphi 0, %s93
      %s110 = sphi 0, %s94
    $region4: #{tpu_custom_call.1} parent=1 // loop_header_branch
      %15 = sbr.rel (%p13) target = $region8
    $region5: #{tpu_custom_call.1} parent=1 // loop_body
      %s17 = ssub.s32 %s12, 1
      %s18 = ssub.s32 %s12, 2
      %s19 = sadd.s32 %s12, 1
      %s20 = ssub.s32 %s12, %s19
      %p21 = scmp.eq.s32.totalorder %s20, 0
      %s23 = sadd.s32 %s22, 1
      %s24 = scalar_select %p21, %s22, %s23
      %p27 = pneg %p21
      %p28 = scmp.eq.s32.totalorder %s12, 1
      %p29 = por %p27, %p28
      %p30 = scmp.ne.s32.totalorder %s22, %s25
      %p31 = scmp.eq.s32.totalorder %s12, 0
      %p32 = por %p30, %p31
      %p33 = scmp.ne.s32.totalorder %s22, %s25
      %p34 = scmp.eq.s32.totalorder %s17, 1
      %p35 = por %p33, %p34
      %p36 = scmp.ne.s32.totalorder %s25, %s26
      %p37 = scmp.eq.s32.totalorder %s17, 0
      %p38 = por %p36, %p37
      %p39 = scmp.ne.s32.totalorder %s25, %s26
      %p40 = scmp.eq.s32.totalorder %s18, 1
      %p41 = por %p39, %p40
      %p43 = scmp.ne.s32.totalorder %s26, %s42
      %p44 = scmp.eq.s32.totalorder %s18, 0
      %p45 = por %p43, %p44
      %s47 = sadd.s32 %s46, 1
      %p50 = scmp.eq.s32.totalorder %s12, 1
      %p51 = scmp.ne.s32.totalorder %s46, %s48
      %p52 = scmp.eq.s32.totalorder %s12, 0
      %p53 = por %p51, %p52
      %p54 = scmp.ne.s32.totalorder %s46, %s48
      %p55 = scmp.eq.s32.totalorder %s17, 1
      %p56 = por %p54, %p55
      %p57 = scmp.ne.s32.totalorder %s48, %s49
      %p58 = scmp.eq.s32.totalorder %s17, 0
      %p59 = por %p57, %p58
      %p60 = scmp.ne.s32.totalorder %s48, %s49
      %p61 = scmp.eq.s32.totalorder %s18, 1
      %p62 = por %p60, %p61
      %p64 = scmp.ne.s32.totalorder %s49, %s63
      %p65 = scmp.eq.s32.totalorder %s18, 0
      %p66 = por %p64, %p65
      %s68 = sadd.s32 %s67, 1
      %p71 = scmp.eq.s32.totalorder %s12, 1
      %p72 = scmp.ne.s32.totalorder %s67, %s69
      %p73 = scmp.eq.s32.totalorder %s12, 0
      %p74 = por %p72, %p73
      %p75 = scmp.ne.s32.totalorder %s67, %s69
      %p76 = scmp.eq.s32.totalorder %s17, 1
      %p77 = por %p75, %p76
      %p78 = scmp.ne.s32.totalorder %s69, %s70
      %p79 = scmp.eq.s32.totalorder %s17, 0
      %p80 = por %p78, %p79
      %p81 = scmp.ne.s32.totalorder %s69, %s70
      %p82 = scmp.eq.s32.totalorder %s18, 1
      %p83 = por %p81, %p82
      %p85 = scmp.ne.s32.totalorder %s70, %s84
      %p86 = scmp.eq.s32.totalorder %s18, 0
      %p87 = por %p85, %p86
      %s88 = ssub.s32 %s12, %s19
      %p89 = scmp.eq.s32.totalorder %s88, 0
      %s91 = sadd.s32 %s90, 1
      %s92 = scalar_select %p89, %s90, %s91
      %p95 = pneg %p89
      %p96 = scmp.eq.s32.totalorder %s12, 1
      %p97 = por %p95, %p96
      %p98 = scmp.ne.s32.totalorder %s90, %s93
      %p99 = scmp.eq.s32.totalorder %s12, 0
      %p100 = por %p98, %p99
      %p101 = scmp.ne.s32.totalorder %s90, %s93
      %p102 = scmp.eq.s32.totalorder %s17, 1
      %p103 = por %p101, %p102
      %p104 = scmp.ne.s32.totalorder %s93, %s94
      %p105 = scmp.eq.s32.totalorder %s17, 0
      %p106 = por %p104, %p105
      %p107 = scmp.ne.s32.totalorder %s93, %s94
      %p108 = scmp.eq.s32.totalorder %s18, 1
      %p109 = por %p107, %p108
      %p111 = scmp.ne.s32.totalorder %s94, %s110
      %p112 = scmp.eq.s32.totalorder %s18, 0
      %p113 = por %p111, %p112
      %p114 = scmp.le.s32.totalorder 1, %s12
      %p115 = scmp.lt.s32.totalorder %s12, 3
      %p116 = pnand %p114, %p115
      %p117 = pneg %p116
      // Predicated region
      $region9: #{tpu_custom_call.1} parent=5 // pred_check
        _
      $region10: #{tpu_custom_call.1} parent=5 // pred_check_branch
        %119 = sbr.rel (%p116) target = $region12
      $region11: #{tpu_custom_call.1} parent=5 // pred_region
        %s120 = ssub.s32 %s12, 1
        // Predicated region
        $region13: #{tpu_custom_call.1} parent=11 // pred_check
          %p121 = pneg %p59
        $region14: #{tpu_custom_call.1} parent=11 // pred_check_branch
          %123 = sbr.rel (%p121) target = $region16
        $region15: #{tpu_custom_call.1} parent=11 // pred_region
          _
        $region16: #{tpu_custom_call.1} parent=11 // pred_fallthru
          _
        // Predicated region
        $region17: #{tpu_custom_call.1} parent=11 // pred_check
          %p124 = pneg %p80
        $region18: #{tpu_custom_call.1} parent=11 // pred_check_branch
          %126 = sbr.rel (%p124) target = $region20
        $region19: #{tpu_custom_call.1} parent=11 // pred_region
          _
        $region20: #{tpu_custom_call.1} parent=11 // pred_fallthru
          _
      $region12: #{tpu_custom_call.1} parent=5 // pred_fallthru
        _
      %p127 = scmp.lt.s32.totalorder %s12, 2
      // Predicated region
      $region21: #{tpu_custom_call.1} parent=5 // pred_check
        %p128 = pneg %p127
      $region22: #{tpu_custom_call.1} parent=5 // pred_check_branch
        %130 = sbr.rel (%p128) target = $region24
      $region23: #{tpu_custom_call.1} parent=5 // pred_region
        // Predicated region
        $region25: #{tpu_custom_call.1} parent=23 // pred_check
          %p131 = pneg %p32
        $region26: #{tpu_custom_call.1} parent=23 // pred_check_branch
          %133 = sbr.rel (%p131) target = $region28
        $region27: #{tpu_custom_call.1} parent=23 // pred_region
          %p134 = scmp.lt.s32.totalorder %s12, 1
          %s135 = scalar_select %p134, %s12, 1
          %s136 = smul.addr %s135, 8
          %s137 = scalar_lea.vmem %s0, %s136
        $region28: #{tpu_custom_call.1} parent=23 // pred_fallthru
          _
      $region24: #{tpu_custom_call.1} parent=5 // pred_fallthru
        _
      %p138 = scmp.le.s32.totalorder 1, %s12
      %p139 = scmp.lt.s32.totalorder %s12, 3
      %p140 = pnand %p138, %p139
      %p141 = pneg %p140
      // Predicated region
      $region29: #{tpu_custom_call.1} parent=5 // pred_check
        _
      $region30: #{tpu_custom_call.1} parent=5 // pred_check_branch
        %143 = sbr.rel (%p140) target = $region32
      $region31: #{tpu_custom_call.1} parent=5 // pred_region
        %s144 = ssub.s32 %s12, 1
        %p145 = scmp.lt.s32.totalorder %s17, 1
        %s146 = scalar_select %p145, %s17, 1
        %s147 = smul.addr %s146, 8
        %s148 = scalar_lea.vmem %s0, %s147
        %p149 = pneg %p38
        %p150 = pneg %p35
        %p151 = pneg %p59
        %p152 = pneg %p56
        %p153 = pneg %p80
        %p154 = pneg %p77
        %p155 = pneg %p106
        %p156 = pneg %p103
        %s157 = sand.u32 %s93, 1
        %s158 = scalar_lea.sflag [#allocation3], %s157
        %s159 = sand.u32 %s93, 1
        %s160 = smul.addr %s159, 8
        %s161 = scalar_lea.vmem [#allocation2], %s160
        %p162 = scmp.lt.s32.totalorder %s17, 1
        %s163 = scalar_select %p162, %s17, 1
        %s164 = smul.addr %s163, 8
        %s165 = scalar_lea.vmem %s0, %s164
        %s166 = smul.u32 0, 8
        %s167 = sadd.s32 0, %s166
        %s168 = scalar_lea.vmem %s165, %s167
        %v169 = vld [vmem:[%s168] sm:$0xff]
        %v170 = vadd.f32 %v169, 0.0
        %v171 = vadd.f32 %v170, 0.0
        %v172 = vrot.slane %v171, 4
        %v173 = vadd.f32 %v171, %v172
        %v174 = vrot.slane %v173, 2
        %v175 = vadd.f32 %v173, %v174
        %v176 = vrot.slane %v175, 1
        %v177 = vadd.f32 %v175, %v176
        %v178 = vmul.f32 %v177, 0.125
        %v179 = vld [vmem:[%s1] sm:$0xff]
        %v180 = vld [vmem:[%s1 + $0x8] sm:$0xff]
        %v181 = vld [vmem:[%s1 + $0x10] sm:$0xff]
        %v182 = vld [vmem:[%s1 + $0x18] sm:$0xff]
        %v183 = vld [vmem:[%s1 + $0x20] sm:$0xff]
        %v184 = vld [vmem:[%s1 + $0x28] sm:$0xff]
        %v185 = vld [vmem:[%s1 + $0x30] sm:$0xff]
        %v186 = vld [vmem:[%s1 + $0x38] sm:$0xff]
        %v187 = vld [vmem:[%s1 + $0x40] sm:$0xff]
        %v188 = vld [vmem:[%s1 + $0x48] sm:$0xff]
        %v189 = vld [vmem:[%s1 + $0x50] sm:$0xff]
        %v190 = vld [vmem:[%s1 + $0x58] sm:$0xff]
        %v191 = vld [vmem:[%s1 + $0x60] sm:$0xff]
        %v192 = vld [vmem:[%s1 + $0x68] sm:$0xff]
        %v193 = vld [vmem:[%s1 + $0x70] sm:$0xff]
        %v194 = vld [vmem:[%s1 + $0x78] sm:$0xff]
        %195 = vmatprep.subr.mxu0 0.0
        %196 = vmatpush1.msra.mxu0 %v194
        %197 = vmatprep.subr.mxu0 0.0
        %198 = vmatpush1.msra.mxu0 %v193
        %199 = vmatprep.subr.mxu0 0.0
        %200 = vmatpush1.msra.mxu0 %v192
        %201 = vmatprep.subr.mxu0 0.0
        %202 = vmatpush1.msra.mxu0 %v191
        %203 = vmatprep.subr.mxu0 0.0
        %204 = vmatpush1.msra.mxu0 %v190
        %205 = vmatprep.subr.mxu0 0.0
        %206 = vmatpush1.msra.mxu0 %v189
        %207 = vmatprep.subr.mxu0 0.0
        %208 = vmatpush1.msra.mxu0 %v188
        %209 = vmatprep.subr.mxu0 0.0
        %210 = vmatpush1.msra.mxu0 %v187
        %211 = vmatprep.subr.mxu0 0.0
        %212 = vmatpush1.msra.mxu0 %v186
        %213 = vmatprep.subr.mxu0 0.0
        %214 = vmatpush1.msra.mxu0 %v185
        %215 = vmatprep.subr.mxu0 0.0
        %216 = vmatpush1.msra.mxu0 %v184
        %217 = vmatprep.subr.mxu0 0.0
        %218 = vmatpush1.msra.mxu0 %v183
        %219 = vmatprep.subr.mxu0 0.0
        %220 = vmatpush1.msra.mxu0 %v182
        %221 = vmatprep.subr.mxu0 0.0
        %222 = vmatpush1.msra.mxu0 %v181
        %223 = vmatprep.subr.mxu0 0.0
        %224 = vmatpush1.msra.mxu0 %v180
        %225 = vmatprep.subr.mxu0 0.0
        %226 = vmatpush1.msra.mxu0 %v179
        %227 = vmatprep.subr.mxu0 0.0
        %228 = vmatpush2.msra.mxu0 0.0
        %229 = vmatprep.subr.mxu0 0.0
        %230 = vmatpush2.msra.mxu0 0.0
        %231 = vmatprep.subr.mxu0 0.0
        %232 = vmatpush2.msra.mxu0 0.0
        %233 = vmatprep.subr.mxu0 0.0
        %234 = vmatpush2.msra.mxu0 0.0
        %235 = vmatprep.subr.mxu0 0.0
        %236 = vmatpush2.msra.mxu0 0.0
        %237 = vmatprep.subr.mxu0 0.0
        %238 = vmatpush2.msra.mxu0 0.0
        %239 = vmatprep.subr.mxu0 0.0
        %240 = vmatpush2.msra.mxu0 0.0
        %241 = vmatprep.subr.mxu0 0.0
        %242 = vmatpush2.msra.mxu0 0.0
        %243 = vmatprep.subr.mxu0 0.0
        %244 = vmatpush2.msra.mxu0 0.0
        %245 = vmatprep.subr.mxu0 0.0
        %246 = vmatpush2.msra.mxu0 0.0
        %247 = vmatprep.subr.mxu0 0.0
        %248 = vmatpush2.msra.mxu0 0.0
        %249 = vmatprep.subr.mxu0 0.0
        %250 = vmatpush2.msra.mxu0 0.0
        %251 = vmatprep.subr.mxu0 0.0
        %252 = vmatpush2.msra.mxu0 0.0
        %253 = vmatprep.subr.mxu0 0.0
        %254 = vmatpush2.msra.mxu0 0.0
        %255 = vmatprep.subr.mxu0 0.0
        %256 = vmatpush2.msra.mxu0 0.0
        %257 = vmatprep.subr.mxu0 0.0
        %258 = vmatpush2.msra.mxu0 0.0
        %259 = vmatprep.mubr.f32.mxu0 0.0
        %260 = vmatmul.mubr.f32.gmra.mxu0 %v178
        %v261 = vpop.f32.mrf.mxu0
        %v262 = vadd.f32 0.0, %v261
        %v263 = vpop.f32.mrf.mxu0
        %264 = vdwg.mxu0
        %v265 = vmax.f32 %v262, 0.0
        %v266 = vld [vmem:[%s2] sm:$0xff]
        %vm267 = vcmask 64512
        %v269 = vsel %vm267, %v265, 0
        %271 = vmatprep.subr.mxu0 0.0
        %272 = vmatpush1.msra.mxu0 0.0
        %273 = vmatprep.subr.mxu0 0.0
        %274 = vmatpush1.msra.mxu0 0.0
        %275 = vmatprep.subr.mxu0 0.0
        %276 = vmatpush1.msra.mxu0 0.0
        %277 = vmatprep.subr.mxu0 0.0
        %278 = vmatpush1.msra.mxu0 0.0
        %279 = vmatprep.subr.mxu0 0.0
        %280 = vmatpush1.msra.mxu0 0.0
        %281 = vmatprep.subr.mxu0 0.0
        %282 = vmatpush1.msra.mxu0 0.0
        %283 = vmatprep.subr.mxu0 0.0
        %284 = vmatpush1.msra.mxu0 0.0
        %285 = vmatprep.subr.mxu0 0.0
        %286 = vmatpush1.msra.mxu0 0.0
        %287 = vmatprep.subr.mxu0 0.0
        %288 = vmatpush1.msra.mxu0 0.0
        %289 = vmatprep.subr.mxu0 0.0
        %290 = vmatpush1.msra.mxu0 0.0
        %291 = vmatprep.subr.mxu0 0.0
        %292 = vmatpush1.msra.mxu0 0.0
        %293 = vmatprep.subr.mxu0 0.0
        %294 = vmatpush1.msra.mxu0 0.0
        %295 = vmatprep.subr.mxu0 0.0
        %296 = vmatpush1.msra.mxu0 0.0
        %297 = vmatprep.subr.mxu0 0.0
        %298 = vmatpush1.msra.mxu0 0.0
        %299 = vmatprep.subr.mxu0 0.0
        %300 = vmatpush1.msra.mxu0 0.0
        %301 = vmatprep.subr.mxu0 0.0
        %302 = vmatpush1.msra.mxu0 %v266
        %303 = vmatprep.subr.mxu0 0.0
        %304 = vmatpush2.msra.mxu0 0.0
        %305 = vmatprep.subr.mxu0 0.0
        %306 = vmatpush2.msra.mxu0 0.0
        %307 = vmatprep.subr.mxu0 0.0
        %308 = vmatpush2.msra.mxu0 0.0
        %309 = vmatprep.subr.mxu0 0.0
        %310 = vmatpush2.msra.mxu0 0.0
        %311 = vmatprep.subr.mxu0 0.0
        %312 = vmatpush2.msra.mxu0 0.0
        %313 = vmatprep.subr.mxu0 0.0
        %314 = vmatpush2.msra.mxu0 0.0
        %315 = vmatprep.subr.mxu0 0.0
        %316 = vmatpush2.msra.mxu0 0.0
        %317 = vmatprep.subr.mxu0 0.0
        %318 = vmatpush2.msra.mxu0 0.0
        %319 = vmatprep.subr.mxu0 0.0
        %320 = vmatpush2.msra.mxu0 0.0
        %321 = vmatprep.subr.mxu0 0.0
        %322 = vmatpush2.msra.mxu0 0.0
        %323 = vmatprep.subr.mxu0 0.0
        %324 = vmatpush2.msra.mxu0 0.0
        %325 = vmatprep.subr.mxu0 0.0
        %326 = vmatpush2.msra.mxu0 0.0
        %327 = vmatprep.subr.mxu0 0.0
        %328 = vmatpush2.msra.mxu0 0.0
        %329 = vmatprep.subr.mxu0 0.0
        %330 = vmatpush2.msra.mxu0 0.0
        %331 = vmatprep.subr.mxu0 0.0
        %332 = vmatpush2.msra.mxu0 0.0
        %333 = vmatprep.subr.mxu0 0.0
        %334 = vmatpush2.msra.mxu0 0.0
        %335 = vmatprep.mubr.f32.mxu0 0.0
        %336 = vmatmul.mubr.f32.gmra.mxu0 %v269
        %v337 = vpop.f32.mrf.mxu0
        %v338 = vadd.f32 0.0, %v337
        %v339 = vpop.f32.mrf.mxu0
        %340 = vdwg.mxu0
        %v341 = vxor.u32 %v338, 2147483648
        %v342 = vmul.f32 %v341, 1.442695
        %v343 = vpow.pop %v342
        %v344 = vadd.f32 %v343, 1.0
        %v345 = vrcp.pop %v344
        %v346 = vmul.f32 1.0, %v345
        %v347 = vlaneseq
        %v348 = vshrl.u32 %v347, 7
        %v349 = vsub.s32 0, %v348
        %v350 = vrot.slane %v346, %v349
        %v351 = vmul.f32 %v169, %v350
        %s352 = scalar_lea.vmem %s161, %s167 [#allocation2]
        %353 = vst [vmem:[%s352] sm:$0xff] %v351
        %s354 = sand.u32 %s93, 1
        %s355 = scalar_lea.sflag [#allocation3], %s354
        %s356 = sand.u32 %s93, 1
        %s357 = smul.addr %s356, 8
        %s358 = scalar_lea.vmem [#allocation2], %s357
        // Predicated region
        $region33: #{tpu_custom_call.1} parent=31 // pred_check
          %p359 = pneg %p103
        $region34: #{tpu_custom_call.1} parent=31 // pred_check_branch
          %361 = sbr.rel (%p359) target = $region36
        $region35: #{tpu_custom_call.1} parent=31 // pred_region
          %s363 = ssub.s32 128, 128
          %364 = vsyncadd %s355, %s363
          %s365 = smul.addr %s17, 128
          %s366 = scalar_lea.hbm %s3, %s365
          %s368 = sshll.u32 %s358, 4
          %s369 = int_to_ptr.vmem [resolvable:$true] %s368
          %371 = dma.vmem_to_hbm [thread:$0]  %s369, 128, %s366, %s355
        $region36: #{tpu_custom_call.1} parent=31 // pred_fallthru
          _
      $region32: #{tpu_custom_call.1} parent=5 // pred_fallthru
        _
      %p372 = scmp.le.s32.totalorder 2, %s12
      // Predicated region
      $region37: #{tpu_custom_call.1} parent=5 // pred_check
        %p373 = pneg %p372
      $region38: #{tpu_custom_call.1} parent=5 // pred_check_branch
        %375 = sbr.rel (%p373) target = $region40
      $region39: #{tpu_custom_call.1} parent=5 // pred_region
        %s376 = ssub.s32 %s12, 2
        // Predicated region
        $region41: #{tpu_custom_call.1} parent=39 // pred_check
          %p377 = pneg %p109
        $region42: #{tpu_custom_call.1} parent=39 // pred_check_branch
          %379 = sbr.rel (%p377) target = $region44
        $region43: #{tpu_custom_call.1} parent=39 // pred_region
          %s380 = sand.u32 %s94, 1
          %s381 = scalar_lea.sflag [#allocation3], %s380
          %s382 = sand.u32 %s94, 1
          %s383 = smul.addr %s382, 8
          %s384 = scalar_lea.vmem [#allocation2], %s383
          %385 = dma.done %s381, 128
        $region44: #{tpu_custom_call.1} parent=39 // pred_fallthru
          _
      $region40: #{tpu_custom_call.1} parent=5 // pred_fallthru
        _
    $region6: #{tpu_custom_call.1} parent=1 // loop_footer
      %s16 = sadd.s32 1, %s12
    $region7: #{tpu_custom_call.1} parent=1 // loop_footer_branch
      %11 = sbr.rel target = $region3
    $region8: #{tpu_custom_call.1} parent=1 // loop_exit
      _
    %386 = vsyncpa [#allocation3], 1
    %s387 = scalar_lea.sflag [#allocation3], 1
    %388 = vsyncpa %s387, 1

</llo_original>
